<compile_context>
chip_gen: v5e
topology: v5e:2x2
jax: 0.10.0
libtpu: 0.0.40
codegen_flags: <defaults>
</compile_context>

<pallas_src>
import functools

import jax
import jax.numpy as jnp
from jax.experimental import pallas as pl
from jax.experimental.pallas import tpu as pltpu

ALPHA = 0.5
GAMMA = 2
LANES = 128
# 8192 rows * 128 lanes * 4 B = 4 MiB per f32 input tile; 2 inputs x 2 buffers
# = 16 MiB, inside the 32 MiB scoped-VMEM limit requested below and well inside
# v7x's 64 MiB physical VMEM.
MAX_BLOCK_ROWS = 8192
_VMEM_LIMIT_BYTES = 32 * 1024 * 1024


def _sublane_multiple(dtype):
    """Required second-to-last block multiple for a given element width."""
    return {4: 8, 2: 16, 1: 32}.get(jnp.dtype(dtype).itemsize, 8)


def _bce_from_logits(x, t):
    """Element-wise binary cross entropy from logits (f32).

    Matches torch.sigmoid + F.binary_cross_entropy (including the clamp of the
    log terms at -100) using only 2 transcendentals per element.
    """
    # softplus(x) = max(x, 0) + log1p(exp(-|x|)) = -log(1 - sigmoid(x))
    sp = jnp.maximum(x, 0.0) + jnp.log1p(jnp.exp(-jnp.abs(x)))
    neg_log_p = jnp.minimum(sp - x, 100.0)     # -log(p),   clamped (torch: log >= -100)
    neg_log_1mp = jnp.minimum(sp, 100.0)       # -log(1-p), clamped
    # Two-term form kept on purpose: valid for soft (non-binary) targets too.
    return t * neg_log_p + (1.0 - t) * neg_log_1mp


def _partial_bce_kernel(x_ref, t_ref, p_ref, *, last_block, rows_valid,
                        needs_row_mask):
    """Writes the lane-wise partial BCE sum of this block into p_ref (1,1,128).

    Steady-state blocks are mask-free; only the last block (and only when the
    grid overhangs the row count) applies a row mask under pl.when.
    """
    x = x_ref[...].astype(jnp.float32)
    t = t_ref[...].astype(jnp.float32)   # f32 cast happens here, not in HBM
    bce = _bce_from_logits(x, t)
    block_rows = bce.shape[0]

    def _write(vals):
        # (block_rows, 128) -> (1, 128): VPU adds only; cross-lane/cross-block
        # reduction happens once, outside the kernel, on num_blocks*128 values.
        p_ref[...] = jnp.sum(vals, axis=0, keepdims=True).reshape(1, 1, LANES)

    if not needs_row_mask:
        _write(bce)
    else:
        i = pl.program_id(0)

        @pl.when(i < last_block)
        def _steady():
            _write(bce)

        @pl.when(i == last_block)
        def _last():
            # Rows >= rows_valid are grid overhang (unspecified data) -> mask.
            # (int32 row math: supports up to 2**31 rows ~ 2.7e11 elements.)
            row = jax.lax.broadcasted_iota(jnp.int32, bce.shape, 0)
            valid = (i * block_rows + row) < rows_valid
            _write(jnp.where(valid, bce, 0.0))


def focal_loss(inputs, targets, alpha=ALPHA, gamma=GAMMA, smooth=1,
               _max_block_rows=MAX_BLOCK_ROWS):
    """Pallas equivalent of FocalLoss.forward. Returns a scalar f32."""
    del smooth  # unused, matching the PyTorch module

    n = inputs.size
    x = inputs.reshape(-1)                     # free reshape, native dtype
    t = targets.reshape(-1)

    # Native-dtype streaming: no wrapper-side f32 materialization of targets.
    # bool -> int8 (same width) keeps the kernel DMA at 1 B/elem.
    if jnp.issubdtype(t.dtype, jnp.bool_):
        t = t.astype(jnp.int8)
    if not jnp.issubdtype(x.dtype, jnp.floating):
        x = x.astype(jnp.float32)

    rows_full = n // LANES
    tail = n - rows_full * LANES

    kernel_sum = jnp.float32(0.0)
    if rows_full > 0:
        m = rows_full * LANES
        # Aligned common case (n % 128 == 0): pure bitcast reshape, zero
        # wrapper copies.  Ragged case: kernel runs on the aligned prefix only
        # (one prefix slice per input), tail handled by jnp below.
        x_main = (x[:m] if tail else x).reshape(rows_full, LANES)
        t_main = (t[:m] if tail else t).reshape(rows_full, LANES)

        if rows_full <= _max_block_rows:
            # Single block == full array: no (8,128)/(32,128) constraint,
            # no padding, no mask.
            block_rows = rows_full
        else:
            # Multi-block: block rows must satisfy the sublane multiple of the
            # narrowest input dtype (32 for int8, 16 for bf16, 8 for f32).
            mult = max(_sublane_multiple(x_main.dtype),
                       _sublane_multiple(t_main.dtype))
            block_rows = max((_max_block_rows // mult) * mult, mult)
            if block_rows >= rows_full:
                block_rows = rows_full

        num_blocks = pl.cdiv(rows_full, block_rows)
        needs_row_mask = (rows_full % block_rows) != 0

        kernel = functools.partial(
            _partial_bce_kernel,
            last_block=num_blocks - 1,
            rows_valid=rows_full,
            needs_row_mask=needs_row_mask,
        )

        partials = pl.pallas_call(
            kernel,
            out_shape=jax.ShapeDtypeStruct((num_blocks, 1, LANES), jnp.float32),
            grid_spec=pltpu.PrefetchScalarGridSpec(
                num_scalar_prefetch=0,
                grid=(num_blocks,),
                in_specs=[
                    pl.BlockSpec((block_rows, LANES), lambda i: (i, 0)),
                    pl.BlockSpec((block_rows, LANES), lambda i: (i, 0)),
                ],
                out_specs=pl.BlockSpec((1, 1, LANES), lambda i: (i, 0, 0)),
            ),
            compiler_params=pltpu.CompilerParams(
                # Independent per-block partials -> parallel axis.  On v7x this
                # is intended to shard across both TensorCores; if a trace
                # shows one core doing all steps, switch to an explicit
                # CORE_PARALLEL leading axis.
                dimension_semantics=("parallel",),
                # 16 MiB of double-buffered input tiles + headroom; raises the
                # v5e 16 MiB default, matches v6e/v7x defaults.
                vmem_limit_bytes=_VMEM_LIMIT_BYTES,
            ),
        )(x_main, t_main)
        kernel_sum = jnp.sum(partials)

    if tail:
        # <=127 leftover elements: plain jnp in the (already tiny) epilogue —
        # cheaper than padding/copying the whole array just to round up.
        x_tail = x[rows_full * LANES:].astype(jnp.float32)
        t_tail = t[rows_full * LANES:].astype(jnp.float32)
        kernel_sum = kernel_sum + jnp.sum(_bce_from_logits(x_tail, t_tail))

    # Scalar epilogue: final mean + focal transform on ONE value.
    mean_bce = kernel_sum / n
    bce_exp = jnp.exp(-mean_bce)
    return alpha * (1.0 - bce_exp) ** gamma * mean_bce


def _focal_loss_ref(inputs, targets, alpha=ALPHA, gamma=GAMMA):
    """Pure-JAX reference mirroring the PyTorch module (sigmoid + clamped BCE)."""
    p = jax.nn.sigmoid(inputs.reshape(-1).astype(jnp.float32))
    t = targets.reshape(-1).astype(jnp.float32)
    bce = jnp.mean(
        -(t * jnp.maximum(jnp.log(p), -100.0)
          + (1.0 - t) * jnp.maximum(jnp.log1p(-p), -100.0))
    )
    return alpha * (1.0 - jnp.exp(-bce)) ** gamma * bce


if __name__ == "__main__":
    key = jax.random.PRNGKey(0)
    k_x, k_t, k_x2, k_t2, k_x3, k_t3 = jax.random.split(key, 6)

    # 1) Primary check: NCHW logits / f32 binary targets, 128-aligned fast path
    #    (zero wrapper copies, single block).
    x = jax.random.normal(k_x, (2, 4, 16, 16), dtype=jnp.float32)
    t = (jax.random.uniform(k_t, (2, 4, 16, 16)) > 0.5).astype(jnp.float32)
    loss = focal_loss(x, t)
    jax.block_until_ready(loss)
    ref = _focal_loss_ref(x, t)
    assert jnp.allclose(loss, ref, rtol=1e-5, atol=1e-6), (loss, ref)

    # 2) Ragged size (n % 128 != 0) with a tiny forced block size: exercises
    #    the aligned-prefix slice, the last-block row mask, and the jnp tail.
    x2 = jax.random.normal(k_x2, (2, 3, 17, 17), dtype=jnp.float32)
    t2 = (jax.random.uniform(k_t2, (2, 3, 17, 17)) > 0.5).astype(jnp.float32)
    loss2 = focal_loss(x2, t2, _max_block_rows=8)
    jax.block_until_ready(loss2)
    ref2 = _focal_loss_ref(x2, t2)
    assert jnp.allclose(loss2, ref2, rtol=1e-5, atol=1e-6), (loss2, ref2)

    # 3) Native (bool -> int8) targets, multi-block with int8-legal 32-row
    #    blocks and a masked ragged last block.
    x3 = jax.random.normal(k_x3, (2, 4, 24, 24), dtype=jnp.float32)
    t3 = jax.random.uniform(k_t3, (2, 4, 24, 24)) > 0.5          # bool targets
    loss3 = focal_loss(x3, t3, _max_block_rows=32)
    jax.block_until_ready(loss3)
    ref3 = _focal_loss_ref(x3, t3.astype(jnp.float32))
    assert jnp.allclose(loss3, ref3, rtol=1e-5, atol=1e-6), (loss3, ref3)

    print("KERNEL_OK")
</pallas_src>

<mosaic_0001>
module attributes {stable_mosaic.version = 11 : i64} {
  func.func @_partial_bce_kernel(%arg0: i32, %arg1: memref<16x128xf32, #tpu.memory_space<vmem>>, %arg2: memref<16x128xf32, #tpu.memory_space<vmem>>, %arg3: memref<1x1x128xf32, #tpu.memory_space<vmem>>) attributes {dimension_semantics = [#tpu.dimension_semantics<parallel>], iteration_bounds = array<i64: 1>, scalar_prefetch = 0 : i64, scratch_operands = 0 : i64, tpu.core_type = #tpu.core_type<tc>, window_params = [{transform_indices = @transform_0, window_bounds = array<i64: 16, 128>}, {transform_indices = @transform_1, window_bounds = array<i64: 16, 128>}, {transform_indices = @transform_2, window_bounds = array<i64: 1, 1, 128>}]} {
    %c0 = arith.constant 0 : index
    %c0_0 = arith.constant 0 : index
    %0 = vector.load %arg1[%c0, %c0_0] : memref<16x128xf32, #tpu.memory_space<vmem>>, vector<16x128xf32>
    %c0_1 = arith.constant 0 : index
    %c0_2 = arith.constant 0 : index
    %1 = vector.load %arg2[%c0_1, %c0_2] : memref<16x128xf32, #tpu.memory_space<vmem>>, vector<16x128xf32>
    %cst = arith.constant 0.000000e+00 : f32
    %2 = vector.broadcast %cst : f32 to vector<16x128xf32>
    %3 = arith.maximumf %0, %2 : vector<16x128xf32>
    %4 = math.absf %0 : vector<16x128xf32>
    %cst_3 = arith.constant 0.000000e+00 : f32
    %5 = vector.broadcast %cst_3 : f32 to vector<16x128xf32>
    %6 = arith.subf %5, %4 : vector<16x128xf32>
    %7 = math.exp %6 : vector<16x128xf32>
    %8 = math.log1p %7 : vector<16x128xf32>
    %9 = arith.addf %3, %8 : vector<16x128xf32>
    %10 = arith.subf %9, %0 : vector<16x128xf32>
    %cst_4 = arith.constant 1.000000e+02 : f32
    %11 = vector.broadcast %cst_4 : f32 to vector<16x128xf32>
    %12 = arith.minimumf %10, %11 : vector<16x128xf32>
    %cst_5 = arith.constant 1.000000e+02 : f32
    %13 = vector.broadcast %cst_5 : f32 to vector<16x128xf32>
    %14 = arith.minimumf %9, %13 : vector<16x128xf32>
    %15 = arith.mulf %1, %12 : vector<16x128xf32>
    %cst_6 = arith.constant 1.000000e+00 : f32
    %16 = vector.broadcast %cst_6 : f32 to vector<16x128xf32>
    %17 = arith.subf %16, %1 : vector<16x128xf32>
    %18 = arith.mulf %17, %14 : vector<16x128xf32>
    %19 = arith.addf %15, %18 : vector<16x128xf32>
    %cst_7 = arith.constant dense<0.000000e+00> : vector<128xf32>
    %20 = vector.multi_reduction <add>, %19, %cst_7 [0] : vector<16x128xf32> to vector<128xf32>
    %21 = vector.shape_cast %20 : vector<128xf32> to vector<1x128xf32>
    %22 = vector.shape_cast %21 : vector<1x128xf32> to vector<1x1x128xf32>
    %c0_8 = arith.constant 0 : index
    %c0_9 = arith.constant 0 : index
    %c0_10 = arith.constant 0 : index
    %23 = vector.load %arg3[%c0_8, %c0_9, %c0_10] : memref<1x1x128xf32, #tpu.memory_space<vmem>>, vector<1x1x128xf32>
    tpu.vector_store %arg3[%c0_8, %c0_9, %c0_10], %22 {strides = array<i32>} : memref<1x1x128xf32, #tpu.memory_space<vmem>>, vector<1x1x128xf32>,
    return
  }
  func.func @transform_0(%arg0: i32) -> (i32, i32) {
    %c0_i32 = arith.constant 0 : i32
    %c0_i32_0 = arith.constant 0 : i32
    return %arg0, %c0_i32 : i32, i32
  }
  func.func @transform_1(%arg0: i32) -> (i32, i32) {
    %c0_i32 = arith.constant 0 : i32
    %c0_i32_0 = arith.constant 0 : i32
    return %arg0, %c0_i32 : i32, i32
  }
  func.func @transform_2(%arg0: i32) -> (i32, i32, i32) {
    %c0_i32 = arith.constant 0 : i32
    %c0_i32_0 = arith.constant 0 : i32
    %c0_i32_1 = arith.constant 0 : i32
    return %arg0, %c0_i32, %c0_i32_0 : i32, i32, i32
  }
}

</mosaic_0001>

<llo_original>
// kernel: tpu_custom_call.1
$region0: #{tpu_custom_call.1}
  #allocation0 [shape = 'u32[]', space=smem, size = 0x4, offset = 0x4, fixed_abs, tag = 'smem constant byte address 0x4 - core index']
  #allocation1 [shape = 'u32[72,128]{1,0:T(1,128)}', space=vmem, size = 0x9000, scoped, tag = 'internal scratch']
  %s0 = inlined_call_operand.hbm [shape: f32[16,128], index: 0, kind: input, shape index: {}]
  %s1 = inlined_call_operand.hbm [shape: f32[16,128], index: 1, kind: input, shape index: {}]
  %s2 = inlined_call_operand.hbm [shape: f32[1,1,128], index: 2, kind: output, shape index: {}]
  %s3 = sld [smem:[#allocation0]]
  $region26: #{tpu_custom_call.1} parent=0
    _
  %s5 = ssub.s32 1, %s3
  %s6 = scalar_select 0, %s5, %s3
  $region1: #{tpu_custom_call.1} parent=0
    #allocation2 [shape = 'u8[8192]{0}', space=vmem, size = 0x2000, scoped, tag = 'input window, operand 0, single buffered']
    #allocation3 [shape = 's32[1]{0}', space=sflag, size = 0x4, scoped, tag = 'scoped memory for tpu_custom_call.1']
    #allocation4 [shape = 's32[1]{0}', space=sflag, size = 0x4, scoped, tag = 'scoped memory for tpu_custom_call.1']
    #allocation5 [shape = 'u8[8192]{0}', space=vmem, size = 0x2000, scoped, tag = 'input window, operand 1, single buffered']
    #allocation6 [shape = 's32[1]{0}', space=sflag, size = 0x4, scoped, tag = 'scoped memory for tpu_custom_call.1']
    #allocation7 [shape = 'u8[512]{0}', space=vmem, size = 0x400, scoped, tag = 'output window, operand 0, single buffered']
    %7 = vsyncpa [#allocation3], 0
    %8 = vsyncpa [#allocation6], 0
    %9 = vsyncpa [#allocation4], 0
    // Predicated region
    $region2: #{tpu_custom_call.1} parent=1 // pred_check
      _
    $region3: #{tpu_custom_call.1} parent=1 // pred_check_branch
      %11 = sbr.rel (0) target = $region5
    $region4: #{tpu_custom_call.1} parent=1 // pred_region
      %13 = vsyncadd [#allocation3], 0
      %s14 = sshll.u32 %s0, 4
      %s15 = int_to_ptr.hbm [resolvable:$true] %s14
      %s16 = sshll.u32 [#allocation2], 4
      %s17 = int_to_ptr.vmem [resolvable:$true] %s16
      %22 = dma.hbm_to_vmem [thread:$0]  %s15, 256, %s17, [#allocation3], 128, 128, 8
    $region5: #{tpu_custom_call.1} parent=1 // pred_fallthru
      _
    // Predicated region
    $region6: #{tpu_custom_call.1} parent=1 // pred_check
      _
    $region7: #{tpu_custom_call.1} parent=1 // pred_check_branch
      %24 = sbr.rel (0) target = $region9
    $region8: #{tpu_custom_call.1} parent=1 // pred_region
      %26 = vsyncadd [#allocation6], 0
      %s27 = sshll.u32 %s1, 4
      %s28 = int_to_ptr.hbm [resolvable:$true] %s27
      %s29 = sshll.u32 [#allocation5], 4
      %s30 = int_to_ptr.vmem [resolvable:$true] %s29
      %35 = dma.hbm_to_vmem [thread:$0]  %s28, 256, %s30, [#allocation6], 128, 128, 8
    $region9: #{tpu_custom_call.1} parent=1 // pred_fallthru
      _
    // Predicated region
    $region10: #{tpu_custom_call.1} parent=1 // pred_check
      _
    $region11: #{tpu_custom_call.1} parent=1 // pred_check_branch
      %37 = sbr.rel (0) target = $region13
    $region12: #{tpu_custom_call.1} parent=1 // pred_region
      %39 = dma.done [#allocation3], 256
    $region13: #{tpu_custom_call.1} parent=1 // pred_fallthru
      _
    // Predicated region
    $region14: #{tpu_custom_call.1} parent=1 // pred_check
      _
    $region15: #{tpu_custom_call.1} parent=1 // pred_check_branch
      %41 = sbr.rel (0) target = $region17
    $region16: #{tpu_custom_call.1} parent=1 // pred_region
      %43 = dma.done [#allocation6], 256
    $region17: #{tpu_custom_call.1} parent=1 // pred_fallthru
      _
    %v44 = vld [vmem:[#allocation2] sm:$0xff]
    %v45 = vld [vmem:[#allocation2 + $0x8] sm:$0xff]
    %v46 = vld [vmem:[#allocation5] sm:$0xff]
    %v47 = vld [vmem:[#allocation5 + $0x8] sm:$0xff]
    %v48 = vmax.f32 %v44, 0.0
    %v49 = vmax.f32 %v45, 0.0
    %v50 = vand.u32 2147483647, %v44
    %v51 = vand.u32 2147483647, %v45
    %v52 = vsub.f32 0.0, %v50
    %v53 = vsub.f32 0.0, %v51
    %v54 = vmul.f32 %v52, 1.442695
    %v55 = vpow.pop %v54
    %v56 = vmul.f32 %v53, 1.442695
    %v57 = vpow.pop %v56
    %v58 = vadd.f32 %v55, 1.0
    %v59 = vlog2.pop %v58
    %v60 = vmul.f32 %v59, 0.6931472
    %v61 = vmul.f32 -0.5, %v55
    %v62 = vadd.f32 %v61, 1.0
    %v63 = vmul.f32 %v62, %v55
    %v64 = vand.u32 2147483647, %v55
    %vm65 = vcmp.lt.f32.partialorder %v64, 0.0004427343
    %v66 = vsel %vm65, %v63, %v60
    %v67 = vadd.f32 %v57, 1.0
    %v68 = vlog2.pop %v67
    %v69 = vmul.f32 %v68, 0.6931472
    %v70 = vmul.f32 -0.5, %v57
    %v71 = vadd.f32 %v70, 1.0
    %v72 = vmul.f32 %v71, %v57
    %v73 = vand.u32 2147483647, %v57
    %vm74 = vcmp.lt.f32.partialorder %v73, 0.0004427343
    %v75 = vsel %vm74, %v72, %v69
    %v76 = vadd.f32 %v48, %v66
    %v77 = vadd.f32 %v49, %v75
    %v78 = vsub.f32 %v76, %v44
    %v79 = vsub.f32 %v77, %v45
    %v80 = vmin.f32 %v78, 100.0
    %v81 = vmin.f32 %v79, 100.0
    %v82 = vmin.f32 %v76, 100.0
    %v83 = vmin.f32 %v77, 100.0
    %v84 = vmul.f32 %v46, %v80
    %v85 = vmul.f32 %v47, %v81
    %v86 = vsub.f32 1.0, %v46
    %v87 = vsub.f32 1.0, %v47
    %v88 = vmul.f32 %v86, %v82
    %v89 = vmul.f32 %v87, %v83
    %v90 = vadd.f32 %v84, %v88
    %v91 = vadd.f32 %v85, %v89
    %v92 = vadd.f32 %v90, %v91
    %v93 = vrot.slane %v92, 4
    %v94 = vadd.f32 %v92, %v93
    %v95 = vrot.slane %v94, 2
    %v96 = vadd.f32 %v94, %v95
    %v97 = vrot.slane %v96, 1
    %v98 = vadd.f32 %v96, %v97
    %99 = vst [vmem:[#allocation7] sm:$0x1] %v98
    // Predicated region
    $region18: #{tpu_custom_call.1} parent=1 // pred_check
      _
    $region19: #{tpu_custom_call.1} parent=1 // pred_check_branch
      %101 = sbr.rel (0) target = $region21
    $region20: #{tpu_custom_call.1} parent=1 // pred_region
      %103 = vsyncadd [#allocation4], 0
      %s105 = sshll.u32 [#allocation7], 4
      %s106 = int_to_ptr.vmem [resolvable:$true] %s105
      %s107 = sshll.u32 %s2, 4
      %s108 = int_to_ptr.hbm [resolvable:$true] %s107
      %110 = dma.vmem_to_hbm [thread:$0]  %s106, 16, %s108, [#allocation4]
    $region21: #{tpu_custom_call.1} parent=1 // pred_fallthru
      _
    // Predicated region
    $region22: #{tpu_custom_call.1} parent=1 // pred_check
      _
    $region23: #{tpu_custom_call.1} parent=1 // pred_check_branch
      %112 = sbr.rel (0) target = $region25
    $region24: #{tpu_custom_call.1} parent=1 // pred_region
      %114 = dma.done [#allocation4], 16
    $region25: #{tpu_custom_call.1} parent=1 // pred_fallthru
      _
    %115 = vsyncpa [#allocation3], 1
    %116 = vsyncpa [#allocation6], 1
    %117 = vsyncpa [#allocation4], 1

</llo_original>
